<compile_context>
chip_gen: v6e
topology: v6e:2x2x1
jax: 0.10.0
libtpu: 0.0.40
codegen_flags: <defaults>
</compile_context>

<pallas_src>
import math

import jax
import jax.numpy as jnp
from jax import lax
from jax.experimental import pallas as pl
from jax.experimental.pallas import tpu as pltpu

EPS = 1e-5
_LANES = 128


# ----------------------------- budgets --------------------------------------

def _vmem_capacity_bytes():
    try:
        info_fn = getattr(pltpu, "get_tpu_info", None)
        if info_fn is None:
            return None
        return getattr(info_fn(), "vmem_capacity_bytes", None)
    except Exception:
        return None


def _tpu_budgets():
    """(target_tile_bytes, vmem_limit_bytes, min_grid_steps) per generation."""
    vmem = _vmem_capacity_bytes()
    if vmem is None:
        # Unknown backend (interpret mode / old runtime): conservative.
        return 4 * 1024 * 1024, 32 * 1024 * 1024, 2
    if vmem >= 100 * 1024 * 1024:
        # v5e / v6e: 128 MiB physical VMEM, single TensorCore.
        return 8 * 1024 * 1024, 64 * 1024 * 1024, 2
    # v7x: 64 MiB physical VMEM per TC, 2 TCs per chip -> want >=8 grid steps.
    return 4 * 1024 * 1024, 40 * 1024 * 1024, 8


# ----------------------------- helpers --------------------------------------

def _fold_factor(C):
    """Fold r time steps into the lane dim so the last dim is a multiple of 128.
    r is always a power of two."""
    return _LANES // math.gcd(C, _LANES)


def _pick_batch_block(B, row_bytes_f32, target_bytes, min_steps):
    """Batch rows per grid step: as many as fit the tile budget, but keep at
    least min_steps grid steps (pipelining overlap; v7x megacore sharding)."""
    bblk = max(1, min(B, target_bytes // max(row_bytes_f32, 1)))
    eff_steps = min(min_steps, B)
    if eff_steps > 1:
        bblk = min(bblk, max(1, B // eff_steps))
    return bblk


def _pick_time_block(Tf, CF, target_bytes):
    """Folded time rows per grid step for the T-tiled path (multiple of 8
    sublanes unless it covers the whole axis)."""
    rows = max(8, (target_bytes // (CF * 4)) // 8 * 8)
    return min(Tf, rows)


def _fold_channels(v, r, C):
    """v: (rows, r*C) per-lane partial sums.  Returns per-channel totals
    broadcast across the full folded lane width using log2(r) XLU rotations."""
    shift = C
    width = r * C
    while shift < width:
        v = v + pltpu.roll(v, shift=shift, axis=1)
        shift *= 2
    return v


def _replicate_lanes(v, r):
    """Repeat the last (lane) dim r times (r is a power of two): lane l of the
    result holds v[..., l % C].  Cheap in-kernel lane concats instead of HBM
    tiling."""
    while r > 1:
        v = jnp.concatenate([v, v], axis=-1)
        r //= 2
    return v


# ----------------------------- kernels --------------------------------------

def _make_fused_norm_kernel(r, C, T, t_pad):
    """Single-kernel norm over a folded block (Bblk, Tf, CF); full T resident."""
    inv_t = 1.0 / float(T)

    def kernel(x_ref, w_ref, b_ref, y_ref, mean_ref, std_ref):
        xf = x_ref[...].astype(jnp.float32)                       # (Bblk, Tf, CF)

        # Pass 1: per-lane sums -> per-channel sums broadcast across CF lanes.
        s1 = _fold_channels(jnp.sum(xf, axis=1), r, C)            # (Bblk, CF)
        mean = s1 * inv_t

        # Pass 2 (two-pass variance): sum of centered squares.  Zero-padded
        # tail time steps each contribute mean^2 per channel; subtract exactly.
        d = xf - mean[:, None, :]
        s2 = _fold_channels(jnp.sum(d * d, axis=1), r, C)         # (Bblk, CF)
        if t_pad:
            s2 = s2 - float(t_pad) * mean * mean
        var = jnp.maximum(s2 * inv_t, 0.0)                        # unbiased=False

        stdev = jnp.sqrt(var + EPS)
        inv_std = 1.0 / stdev       # exact reciprocal of the *returned* stdev

        w = w_ref[...].astype(jnp.float32)                        # (1, CF)
        b = b_ref[...].astype(jnp.float32)                        # (1, CF)
        scale = w * inv_std                                       # (Bblk, CF)
        shift = b - mean * scale                                  # (Bblk, CF)

        # Hot path: one multiply-add per element of the big lane-dense tile.
        y_ref[...] = (xf * scale[:, None, :] + shift[:, None, :]).astype(y_ref.dtype)

        # First C lanes of the folded width are channels 0..C-1.
        mean_ref[...] = mean[:, None, :C].astype(mean_ref.dtype)
        std_ref[...] = stdev[:, None, :C].astype(std_ref.dtype)

    return kernel


def _make_stats_kernel(r, C, T, Tf, tblk):
    """T-tiled stats reduction: grid (B, nt), nt is the 'arbitrary' axis."""
    CF = r * C
    inv_t = 1.0 / float(T)
    needs_mask = (Tf % tblk) != 0     # ragged last T block -> mask OOB garbage

    def kernel(x_ref, mean_ref, std_ref, s1_acc, s2_acc):
        t = pl.program_id(1)

        @pl.when(t == 0)
        def _():
            s1_acc[...] = jnp.zeros_like(s1_acc)
            s2_acc[...] = jnp.zeros_like(s2_acc)

        xf = x_ref[...].astype(jnp.float32)                       # (1, tblk, CF)
        if needs_mask:
            row = t * tblk + lax.broadcasted_iota(jnp.int32, xf.shape, 1)
            xf = jnp.where(row < Tf, xf, 0.0)

        s1_acc[...] += jnp.sum(xf, axis=1)
        s2_acc[...] += jnp.sum(xf * xf, axis=1)

        @pl.when(t == pl.num_programs(1) - 1)
        def _():
            s1 = _fold_channels(s1_acc[...], r, C)
            s2 = _fold_channels(s2_acc[...], r, C)
            mean = s1 * inv_t
            # TODO(synk): this long-sequence path uses single-pass
            # E[x^2]-mean^2 (f32 accumulation); the fused path is two-pass.
            var = jnp.maximum(s2 * inv_t - mean * mean, 0.0)
            stdev = jnp.sqrt(var + EPS)
            mean_ref[...] = mean[:, None, :C].astype(mean_ref.dtype)
            std_ref[...] = stdev[:, None, :C].astype(std_ref.dtype)

    return kernel


def _make_norm_apply_kernel(r, C):
    """Elementwise apply for the T-tiled norm path."""

    def kernel(x_ref, mean_ref, std_ref, w_ref, b_ref, y_ref):
        xf = x_ref[...].astype(jnp.float32)                       # (Bblk, tblk, CF)
        mean = _replicate_lanes(mean_ref[...].astype(jnp.float32), r)   # (Bblk,1,CF)
        stdev = _replicate_lanes(std_ref[...].astype(jnp.float32), r)   # (Bblk,1,CF)
        w = w_ref[...].astype(jnp.float32)                        # (1, CF)
        b = b_ref[...].astype(jnp.float32)                        # (1, CF)

        inv_std = 1.0 / stdev
        scale = w * inv_std                                       # (Bblk, 1, CF)
        shift = b - mean * scale
        y_ref[...] = (xf * scale + shift).astype(y_ref.dtype)

    return kernel


def _make_denorm_kernel(r, C):
    def kernel(x_ref, mean_ref, std_ref, w_ref, b_ref, y_ref):
        xf = x_ref[...].astype(jnp.float32)                       # (Bblk, tblk, CF)
        mean = _replicate_lanes(mean_ref[...].astype(jnp.float32), r)   # (Bblk,1,CF)
        stdev = _replicate_lanes(std_ref[...].astype(jnp.float32), r)   # (Bblk,1,CF)
        w = w_ref[...].astype(jnp.float32)                        # (1, CF)
        b = b_ref[...].astype(jnp.float32)                        # (1, CF)

        inv_w = 1.0 / (w + EPS * EPS)                             # tiny vector
        scale = stdev * inv_w                                     # (Bblk, 1, CF)
        shift = mean - b * scale
        y_ref[...] = (xf * scale + shift).astype(y_ref.dtype)

    return kernel


# ----------------------------- wrappers -------------------------------------

def _fold_input(x):
    """Pad T to a multiple of the fold factor (zeros) and fold r time steps
    into the lane dim so every vector store is a full 128-lane store."""
    B, T, C = x.shape
    r = _fold_factor(C)
    t_pad = (-T) % r
    if t_pad:
        x = jnp.pad(x, ((0, 0), (0, t_pad), (0, 0)))
    Tf, CF = (T + t_pad) // r, r * C
    return x.reshape(B, Tf, CF), r, t_pad, Tf, CF


def revin_norm(x, affine_weight, affine_bias, *, block_bytes_override=None):
    """mode == 'norm'. Returns (x_normed, mean, stdev); mean/stdev are (B,1,C) f32."""
    B, T, C = x.shape
    xf, r, t_pad, Tf, CF = _fold_input(x)

    w_full = jnp.tile(affine_weight.reshape(1, C).astype(jnp.float32), (1, r))
    b_full = jnp.tile(affine_bias.reshape(1, C).astype(jnp.float32), (1, r))

    target_bytes, vmem_limit, min_steps = _tpu_budgets()
    if block_bytes_override is not None:
        target_bytes = block_bytes_override
    row_bytes = Tf * CF * 4

    stats_shapes = (jax.ShapeDtypeStruct((B, 1, C), jnp.float32),
                    jax.ShapeDtypeStruct((B, 1, C), jnp.float32))

    if row_bytes <= target_bytes:
        # ---- fused single-kernel path: whole T resident per batch block ----
        bblk = _pick_batch_block(B, row_bytes, target_bytes, min_steps)
        nb = pl.cdiv(B, bblk)
        grid_spec = pltpu.PrefetchScalarGridSpec(
            num_scalar_prefetch=0,
            grid=(nb,),
            in_specs=[
                pl.BlockSpec((bblk, Tf, CF), lambda i: (i, 0, 0)),
                pl.BlockSpec((1, CF), lambda i: (0, 0)),
                pl.BlockSpec((1, CF), lambda i: (0, 0)),
            ],
            out_specs=[
                pl.BlockSpec((bblk, Tf, CF), lambda i: (i, 0, 0)),
                pl.BlockSpec((bblk, 1, C), lambda i: (i, 0, 0)),
                pl.BlockSpec((bblk, 1, C), lambda i: (i, 0, 0)),
            ],
        )
        y, mean, stdev = pl.pallas_call(
            _make_fused_norm_kernel(r, C, T, t_pad),
            out_shape=(jax.ShapeDtypeStruct((B, Tf, CF), x.dtype),) + stats_shapes,
            grid_spec=grid_spec,
            compiler_params=pltpu.CompilerParams(
                dimension_semantics=("parallel",),
                vmem_limit_bytes=vmem_limit),
        )(xf, w_full, b_full)
    else:
        # ---- T-tiled two-kernel path for long sequences ----
        tblk = _pick_time_block(Tf, CF, target_bytes)
        nt = pl.cdiv(Tf, tblk)

        mean, stdev = pl.pallas_call(
            _make_stats_kernel(r, C, T, Tf, tblk),
            out_shape=stats_shapes,
            grid_spec=pltpu.PrefetchScalarGridSpec(
                num_scalar_prefetch=0,
                grid=(B, nt),
                in_specs=[pl.BlockSpec((1, tblk, CF), lambda i, t: (i, t, 0))],
                out_specs=[pl.BlockSpec((1, 1, C), lambda i, t: (i, 0, 0)),
                           pl.BlockSpec((1, 1, C), lambda i, t: (i, 0, 0))],
                scratch_shapes=[pltpu.VMEM((1, CF), jnp.float32),
                                pltpu.VMEM((1, CF), jnp.float32)]),
            compiler_params=pltpu.CompilerParams(
                dimension_semantics=("parallel", "arbitrary"),
                vmem_limit_bytes=vmem_limit),
        )(xf)

        y = pl.pallas_call(
            _make_norm_apply_kernel(r, C),
            out_shape=jax.ShapeDtypeStruct((B, Tf, CF), x.dtype),
            grid_spec=pltpu.PrefetchScalarGridSpec(
                num_scalar_prefetch=0,
                grid=(B, nt),
                in_specs=[pl.BlockSpec((1, tblk, CF), lambda i, t: (i, t, 0)),
                          pl.BlockSpec((1, 1, C), lambda i, t: (i, 0, 0)),
                          pl.BlockSpec((1, 1, C), lambda i, t: (i, 0, 0)),
                          pl.BlockSpec((1, CF), lambda i, t: (0, 0)),
                          pl.BlockSpec((1, CF), lambda i, t: (0, 0))],
                out_specs=pl.BlockSpec((1, tblk, CF), lambda i, t: (i, t, 0))),
            compiler_params=pltpu.CompilerParams(
                dimension_semantics=("parallel", "parallel"),
                vmem_limit_bytes=vmem_limit),
        )(xf, mean, stdev, w_full, b_full)

    y = y.reshape(B, T + t_pad, C)
    if t_pad:
        y = y[:, :T, :]
    return y, mean, stdev


def revin_denorm(x, mean, stdev, affine_weight, affine_bias, *,
                 block_bytes_override=None):
    """mode == 'denorm'."""
    B, T, C = x.shape
    xf, r, t_pad, Tf, CF = _fold_input(x)

    mean = mean.reshape(B, 1, C).astype(jnp.float32)
    stdev = stdev.reshape(B, 1, C).astype(jnp.float32)
    w_full = jnp.tile(affine_weight.reshape(1, C).astype(jnp.float32), (1, r))
    b_full = jnp.tile(affine_bias.reshape(1, C).astype(jnp.float32), (1, r))

    target_bytes, vmem_limit, min_steps = _tpu_budgets()
    if block_bytes_override is not None:
        target_bytes = block_bytes_override
    row_bytes = Tf * CF * 4

    if row_bytes <= target_bytes:
        bblk = _pick_batch_block(B, row_bytes, target_bytes, min_steps)
        nb, tblk, nt = pl.cdiv(B, bblk), Tf, 1
    else:
        bblk, nb = 1, B
        tblk = _pick_time_block(Tf, CF, target_bytes)
        nt = pl.cdiv(Tf, tblk)

    y = pl.pallas_call(
        _make_denorm_kernel(r, C),
        out_shape=jax.ShapeDtypeStruct((B, Tf, CF), x.dtype),
        grid_spec=pltpu.PrefetchScalarGridSpec(
            num_scalar_prefetch=0,
            grid=(nb, nt),
            in_specs=[pl.BlockSpec((bblk, tblk, CF), lambda i, t: (i, t, 0)),
                      pl.BlockSpec((bblk, 1, C), lambda i, t: (i, 0, 0)),
                      pl.BlockSpec((bblk, 1, C), lambda i, t: (i, 0, 0)),
                      pl.BlockSpec((1, CF), lambda i, t: (0, 0)),
                      pl.BlockSpec((1, CF), lambda i, t: (0, 0))],
            out_specs=pl.BlockSpec((bblk, tblk, CF), lambda i, t: (i, t, 0))),
        compiler_params=pltpu.CompilerParams(
            dimension_semantics=("parallel", "parallel"),
            vmem_limit_bytes=vmem_limit),
    )(xf, mean, stdev, w_full, b_full)

    y = y.reshape(B, T + t_pad, C)
    if t_pad:
        y = y[:, :T, :]
    return y


# ----------------------------- reference ------------------------------------

def _ref_norm(x, w, b):
    mean = jnp.mean(x, axis=1, keepdims=True)
    var = jnp.var(x, axis=1, keepdims=True)          # ddof=0 == unbiased=False
    stdev = jnp.sqrt(var + EPS)
    y = (x - mean) / stdev * w + b
    return y, mean, stdev


def _ref_denorm(x, mean, stdev, w, b):
    return ((x - b) / (w + EPS * EPS)) * stdev + mean


# ----------------------------- main -----------------------------------------

if __name__ == "__main__":
    # ---- case 1: canonical small shape, default parameters (ones / zeros) ----
    B, T, C = 2, 16, 32          # num_features = 32
    x = jax.random.normal(jax.random.PRNGKey(0), (B, T, C), jnp.float32) * 3.0 + 1.5
    affine_weight = jnp.ones((C,), dtype=jnp.float32)
    affine_bias = jnp.zeros((C,), dtype=jnp.float32)

    y_norm, mean, stdev = revin_norm(x, affine_weight, affine_bias)
    jax.block_until_ready(y_norm)
    y_denorm = revin_denorm(y_norm, mean, stdev, affine_weight, affine_bias)
    jax.block_until_ready(y_denorm)

    ref_y, ref_mean, ref_std = _ref_norm(x, affine_weight, affine_bias)
    ref_back = _ref_denorm(ref_y, ref_mean, ref_std, affine_weight, affine_bias)
    assert jnp.allclose(y_norm, ref_y, atol=1e-5, rtol=1e-5)
    assert jnp.allclose(mean, ref_mean, atol=1e-5, rtol=1e-5)
    assert jnp.allclose(stdev, ref_std, atol=1e-5, rtol=1e-5)
    assert jnp.allclose(y_denorm, ref_back, atol=1e-4, rtol=1e-4)
    assert jnp.allclose(y_denorm, x, atol=1e-3, rtol=1e-3)

    # ---- case 2: T not a multiple of the fold factor (pad path), non-trivial
    #              affine parameters, odd batch ----
    B2, T2, C2 = 3, 10, 32
    k1, k2, k3 = jax.random.split(jax.random.PRNGKey(1), 3)
    x2 = jax.random.normal(k1, (B2, T2, C2), jnp.float32) * 2.0 - 0.5
    w2 = 1.0 + 0.1 * jax.random.normal(k2, (C2,), jnp.float32)
    b2 = 0.1 * jax.random.normal(k3, (C2,), jnp.float32)
    y2, m2, s2 = revin_norm(x2, w2, b2)
    d2 = revin_denorm(y2, m2, s2, w2, b2)
    jax.block_until_ready(d2)
    ry2, rm2, rs2 = _ref_norm(x2, w2, b2)
    rb2 = _ref_denorm(ry2, rm2, rs2, w2, b2)
    assert jnp.allclose(y2, ry2, atol=1e-5, rtol=1e-5)
    assert jnp.allclose(m2, rm2, atol=1e-5, rtol=1e-5)
    assert jnp.allclose(s2, rs2, atol=1e-5, rtol=1e-5)
    assert jnp.allclose(d2, rb2, atol=1e-4, rtol=1e-4)
    assert jnp.allclose(d2, x2, atol=1e-3, rtol=1e-3)

    # ---- case 3: force the T-tiled long-sequence path (small override so the
    #              stats/apply kernels and ragged-T masking are exercised) ----
    B3, T3, C3 = 2, 88, 32
    x3 = jax.random.normal(jax.random.PRNGKey(2), (B3, T3, C3), jnp.float32) * 1.7 + 0.3
    w3 = jnp.ones((C3,), dtype=jnp.float32)
    b3 = jnp.zeros((C3,), dtype=jnp.float32)
    y3, m3, s3 = revin_norm(x3, w3, b3, block_bytes_override=4096)
    d3 = revin_denorm(y3, m3, s3, w3, b3, block_bytes_override=4096)
    jax.block_until_ready(d3)
    ry3, rm3, rs3 = _ref_norm(x3, w3, b3)
    rb3 = _ref_denorm(ry3, rm3, rs3, w3, b3)
    assert jnp.allclose(y3, ry3, atol=1e-4, rtol=1e-4)
    assert jnp.allclose(m3, rm3, atol=1e-4, rtol=1e-4)
    assert jnp.allclose(s3, rs3, atol=1e-4, rtol=1e-4)
    assert jnp.allclose(d3, rb3, atol=1e-4, rtol=1e-4)
    assert jnp.allclose(d3, x3, atol=1e-3, rtol=1e-3)

    print("KERNEL_OK")
</pallas_src>

<mosaic_0001>
module attributes {stable_mosaic.version = 11 : i64} {
  func.func @kernel(%arg0: i32, %arg1: memref<1x4x128xf32, #tpu.memory_space<vmem>>, %arg2: memref<1x128xf32, #tpu.memory_space<vmem>>, %arg3: memref<1x128xf32, #tpu.memory_space<vmem>>, %arg4: memref<1x4x128xf32, #tpu.memory_space<vmem>>, %arg5: memref<1x1x32xf32, #tpu.memory_space<vmem>>, %arg6: memref<1x1x32xf32, #tpu.memory_space<vmem>>) attributes {dimension_semantics = [#tpu.dimension_semantics<parallel>], iteration_bounds = array<i64: 2>, scalar_prefetch = 0 : i64, scratch_operands = 0 : i64, tpu.core_type = #tpu.core_type<tc>, window_params = [{transform_indices = @transform_0, window_bounds = array<i64: 1, 4, 128>}, {pipeline_mode = #tpu.pipeline_mode<synchronous>, transform_indices = @transform_1, window_bounds = array<i64: 1, 128>}, {pipeline_mode = #tpu.pipeline_mode<synchronous>, transform_indices = @transform_2, window_bounds = array<i64: 1, 128>}, {transform_indices = @transform_3, window_bounds = array<i64: 1, 4, 128>}, {transform_indices = @transform_4, window_bounds = array<i64: 1, 1, 32>}, {transform_indices = @transform_5, window_bounds = array<i64: 1, 1, 32>}]} {
    %c0 = arith.constant 0 : index
    %c0_0 = arith.constant 0 : index
    %c0_1 = arith.constant 0 : index
    %0 = vector.load %arg1[%c0, %c0_0, %c0_1] : memref<1x4x128xf32, #tpu.memory_space<vmem>>, vector<1x4x128xf32>
    %cst = arith.constant dense<0.000000e+00> : vector<1x128xf32>
    %1 = vector.multi_reduction <add>, %0, %cst [1] : vector<1x4x128xf32> to vector<1x128xf32>
    %c32_i32 = arith.constant 32 : i32
    %2 = tpu.dynamic_rotate %1 by %c32_i32 dim 1 : vector<1x128xf32>, i32 -> vector<1x128xf32>
    %3 = arith.addf %1, %2 : vector<1x128xf32>
    %c64_i32 = arith.constant 64 : i32
    %4 = tpu.dynamic_rotate %3 by %c64_i32 dim 1 : vector<1x128xf32>, i32 -> vector<1x128xf32>
    %5 = arith.addf %3, %4 : vector<1x128xf32>
    %cst_2 = arith.constant 6.250000e-02 : f32
    %6 = vector.broadcast %cst_2 : f32 to vector<1x128xf32>
    %7 = arith.mulf %5, %6 : vector<1x128xf32>
    %8 = vector.shape_cast %7 : vector<1x128xf32> to vector<1x1x128xf32>
    %9 = vector.broadcast %8 : vector<1x1x128xf32> to vector<1x4x128xf32>
    %10 = arith.subf %0, %9 : vector<1x4x128xf32>
    %11 = arith.mulf %10, %10 : vector<1x4x128xf32>
    %cst_3 = arith.constant dense<0.000000e+00> : vector<1x128xf32>
    %12 = vector.multi_reduction <add>, %11, %cst_3 [1] : vector<1x4x128xf32> to vector<1x128xf32>
    %c32_i32_4 = arith.constant 32 : i32
    %13 = tpu.dynamic_rotate %12 by %c32_i32_4 dim 1 : vector<1x128xf32>, i32 -> vector<1x128xf32>
    %14 = arith.addf %12, %13 : vector<1x128xf32>
    %c64_i32_5 = arith.constant 64 : i32
    %15 = tpu.dynamic_rotate %14 by %c64_i32_5 dim 1 : vector<1x128xf32>, i32 -> vector<1x128xf32>
    %16 = arith.addf %14, %15 : vector<1x128xf32>
    %cst_6 = arith.constant 6.250000e-02 : f32
    %17 = vector.broadcast %cst_6 : f32 to vector<1x128xf32>
    %18 = arith.mulf %16, %17 : vector<1x128xf32>
    %cst_7 = arith.constant 0.000000e+00 : f32
    %19 = vector.broadcast %cst_7 : f32 to vector<1x128xf32>
    %20 = arith.maximumf %18, %19 : vector<1x128xf32>
    %cst_8 = arith.constant 9.99999974E-6 : f32
    %21 = vector.broadcast %cst_8 : f32 to vector<1x128xf32>
    %22 = arith.addf %20, %21 : vector<1x128xf32>
    %23 = math.sqrt %22 : vector<1x128xf32>
    %cst_9 = arith.constant 1.000000e+00 : f32
    %24 = vector.broadcast %cst_9 : f32 to vector<1x128xf32>
    %25 = arith.divf %24, %23 : vector<1x128xf32>
    %c0_10 = arith.constant 0 : index
    %c0_11 = arith.constant 0 : index
    %26 = vector.load %arg2[%c0_10, %c0_11] : memref<1x128xf32, #tpu.memory_space<vmem>>, vector<1x128xf32>
    %c0_12 = arith.constant 0 : index
    %c0_13 = arith.constant 0 : index
    %27 = vector.load %arg3[%c0_12, %c0_13] : memref<1x128xf32, #tpu.memory_space<vmem>>, vector<1x128xf32>
    %28 = arith.mulf %26, %25 : vector<1x128xf32>
    %29 = arith.mulf %7, %28 : vector<1x128xf32>
    %30 = arith.subf %27, %29 : vector<1x128xf32>
    %31 = vector.shape_cast %28 : vector<1x128xf32> to vector<1x1x128xf32>
    %32 = vector.broadcast %31 : vector<1x1x128xf32> to vector<1x4x128xf32>
    %33 = arith.mulf %0, %32 : vector<1x4x128xf32>
    %34 = vector.shape_cast %30 : vector<1x128xf32> to vector<1x1x128xf32>
    %35 = vector.broadcast %34 : vector<1x1x128xf32> to vector<1x4x128xf32>
    %36 = arith.addf %33, %35 : vector<1x4x128xf32>
    %c0_14 = arith.constant 0 : index
    %c0_15 = arith.constant 0 : index
    %c0_16 = arith.constant 0 : index
    %37 = vector.load %arg4[%c0_14, %c0_15, %c0_16] : memref<1x4x128xf32, #tpu.memory_space<vmem>>, vector<1x4x128xf32>
    tpu.vector_store %arg4[%c0_14, %c0_15, %c0_16], %36 {strides = array<i32>} : memref<1x4x128xf32, #tpu.memory_space<vmem>>, vector<1x4x128xf32>,
    %38 = vector.extract_strided_slice %7 {offsets = [0, 0], sizes = [1, 32], strides = [1, 1]} : vector<1x128xf32> to vector<1x32xf32>
    %39 = vector.shape_cast %38 : vector<1x32xf32> to vector<1x1x32xf32>
    %c0_17 = arith.constant 0 : index
    %c0_18 = arith.constant 0 : index
    %c0_19 = arith.constant 0 : index
    %40 = vector.load %arg5[%c0_17, %c0_18, %c0_19] : memref<1x1x32xf32, #tpu.memory_space<vmem>>, vector<1x1x32xf32>
    tpu.vector_store %arg5[%c0_17, %c0_18, %c0_19], %39 {strides = array<i32>} : memref<1x1x32xf32, #tpu.memory_space<vmem>>, vector<1x1x32xf32>,
    %41 = vector.extract_strided_slice %23 {offsets = [0, 0], sizes = [1, 32], strides = [1, 1]} : vector<1x128xf32> to vector<1x32xf32>
    %42 = vector.shape_cast %41 : vector<1x32xf32> to vector<1x1x32xf32>
    %c0_20 = arith.constant 0 : index
    %c0_21 = arith.constant 0 : index
    %c0_22 = arith.constant 0 : index
    %43 = vector.load %arg6[%c0_20, %c0_21, %c0_22] : memref<1x1x32xf32, #tpu.memory_space<vmem>>, vector<1x1x32xf32>
    tpu.vector_store %arg6[%c0_20, %c0_21, %c0_22], %42 {strides = array<i32>} : memref<1x1x32xf32, #tpu.memory_space<vmem>>, vector<1x1x32xf32>,
    return
  }
  func.func @transform_0(%arg0: i32) -> (i32, i32, i32) {
    %c0_i32 = arith.constant 0 : i32
    %c0_i32_0 = arith.constant 0 : i32
    %c0_i32_1 = arith.constant 0 : i32
    return %arg0, %c0_i32, %c0_i32_0 : i32, i32, i32
  }
  func.func @transform_1(%arg0: i32) -> (i32, i32) {
    %c0_i32 = arith.constant 0 : i32
    %c0_i32_0 = arith.constant 0 : i32
    %c0_i32_1 = arith.constant 0 : i32
    return %c0_i32, %c0_i32_0 : i32, i32
  }
  func.func @transform_2(%arg0: i32) -> (i32, i32) {
    %c0_i32 = arith.constant 0 : i32
    %c0_i32_0 = arith.constant 0 : i32
    %c0_i32_1 = arith.constant 0 : i32
    return %c0_i32, %c0_i32_0 : i32, i32
  }
  func.func @transform_3(%arg0: i32) -> (i32, i32, i32) {
    %c0_i32 = arith.constant 0 : i32
    %c0_i32_0 = arith.constant 0 : i32
    %c0_i32_1 = arith.constant 0 : i32
    return %arg0, %c0_i32, %c0_i32_0 : i32, i32, i32
  }
  func.func @transform_4(%arg0: i32) -> (i32, i32, i32) {
    %c0_i32 = arith.constant 0 : i32
    %c0_i32_0 = arith.constant 0 : i32
    %c0_i32_1 = arith.constant 0 : i32
    return %arg0, %c0_i32, %c0_i32_0 : i32, i32, i32
  }
  func.func @transform_5(%arg0: i32) -> (i32, i32, i32) {
    %c0_i32 = arith.constant 0 : i32
    %c0_i32_0 = arith.constant 0 : i32
    %c0_i32_1 = arith.constant 0 : i32
    return %arg0, %c0_i32, %c0_i32_0 : i32, i32, i32
  }
}

</mosaic_0001>

<llo_original>
// kernel: tpu_custom_call.1
$region0: #{tpu_custom_call.1}
  #allocation0 [shape = 'u32[]', space=smem, size = 0x4, offset = 0x4, fixed_abs, tag = 'smem constant byte address 0x4 - core index']
  #allocation1 [shape = 'u32[144,128]{1,0:T(1,128)}', space=vmem, size = 0x12000, scoped, tag = 'internal scratch']
  %s0 = inlined_call_operand.hbm [shape: f32[2,4,128], index: 0, kind: input, shape index: {}]
  %s1 = inlined_call_operand.vmem [shape: f32[1,128], index: 1, kind: input, shape index: {}]
  %s2 = inlined_call_operand.vmem [shape: f32[1,128], index: 2, kind: input, shape index: {}]
  %s3 = inlined_call_operand.hbm [shape: f32[2,4,128], index: 3, kind: output, shape index: {0}]
  %s4 = inlined_call_operand.hbm [shape: f32[2,1,32], index: 4, kind: output, shape index: {1}]
  %s5 = inlined_call_operand.hbm [shape: f32[2,1,32], index: 5, kind: output, shape index: {2}]
  %6 = xla_tuple %s3, %s4, %s5
  %s7 = sld [smem:[#allocation0]]
  $region65: #{tpu_custom_call.1} parent=0
    _
  %s9 = ssub.s32 1, %s7
  %s10 = scalar_select 0, %s9, %s7
  $region1: #{tpu_custom_call.1} parent=0
    #allocation2 [shape = 'u8[4096]{0}', space=vmem, size = 0x1000, scoped, tag = 'input window, operand 0']
    #allocation3 [shape = 's32[2]{0}', space=sflag, size = 0x8, scoped, tag = 'scoped memory for tpu_custom_call.1']
    #allocation4 [shape = 's32[2]{0}', space=sflag, size = 0x8, scoped, tag = 'scoped memory for tpu_custom_call.1']
    #allocation5 [shape = 'u8[4096]{0}', space=vmem, size = 0x1000, scoped, tag = 'output window, operand 0']
    #allocation6 [shape = 'u8[1024]{0}', space=vmem, size = 0x400, scoped, tag = 'output window, operand 1']
    #allocation7 [shape = 's32[2]{0}', space=sflag, size = 0x8, scoped, tag = 'scoped memory for tpu_custom_call.1']
    #allocation8 [shape = 'u8[1024]{0}', space=vmem, size = 0x400, scoped, tag = 'output window, operand 2']
    %11 = vsyncpa [#allocation3], 0
    %s12 = scalar_lea.sflag [#allocation3], 1
    %13 = vsyncpa %s12, 0
    %14 = vsyncpa [#allocation4], 0
    %s15 = scalar_lea.sflag [#allocation4], 1
    %16 = vsyncpa %s15, 0
    %17 = vsyncpa [#allocation7], 0
    %s18 = scalar_lea.sflag [#allocation7], 1
    %19 = vsyncpa %s18, 0
    loop: start=0, step=1, limit=4
    $region2: #{tpu_custom_call.1} parent=1 // loop_pre_header
      _
    $region3: #{tpu_custom_call.1} parent=1 // loop_header
      %s21 = sphi 0, %s25
      %p22 = scmp.ge.s32.totalorder %s21, 4
      %s31 = sphi 0, %s33
      %s34 = sphi 0, %s31
      %s35 = sphi 0, %s34
      %s51 = sphi 0, %s35
      %s55 = sphi 0, %s55
      %s57 = sphi 0, %s55
      %s58 = sphi 0, %s57
      %s72 = sphi 0, %s58
      %s76 = sphi 0, %s76
      %s78 = sphi 0, %s76
      %s79 = sphi 0, %s78
      %s93 = sphi 0, %s79
      %s99 = sphi 0, %s101
      %s102 = sphi 0, %s99
      %s103 = sphi 0, %s102
      %s119 = sphi 0, %s103
      %s125 = sphi 0, %s127
      %s128 = sphi 0, %s125
      %s129 = sphi 0, %s128
      %s145 = sphi 0, %s129
      %s151 = sphi 0, %s153
      %s154 = sphi 0, %s151
      %s155 = sphi 0, %s154
      %s171 = sphi 0, %s155
    $region4: #{tpu_custom_call.1} parent=1 // loop_header_branch
      %24 = sbr.rel (%p22) target = $region8
    $region5: #{tpu_custom_call.1} parent=1 // loop_body
      %s26 = ssub.s32 %s21, 1
      %s27 = ssub.s32 %s21, 2
      %s28 = sadd.s32 %s21, 1
      %s29 = ssub.s32 %s21, %s28
      %p30 = scmp.eq.s32.totalorder %s29, 0
      %s32 = sadd.s32 %s31, 1
      %s33 = scalar_select %p30, %s31, %s32
      %p36 = pneg %p30
      %p37 = scmp.eq.s32.totalorder %s21, 1
      %p38 = por %p36, %p37
      %p39 = scmp.ne.s32.totalorder %s31, %s34
      %p40 = scmp.eq.s32.totalorder %s21, 0
      %p41 = por %p39, %p40
      %p42 = scmp.ne.s32.totalorder %s31, %s34
      %p43 = scmp.eq.s32.totalorder %s26, 1
      %p44 = por %p42, %p43
      %p45 = scmp.ne.s32.totalorder %s34, %s35
      %p46 = scmp.eq.s32.totalorder %s26, 0
      %p47 = por %p45, %p46
      %p48 = scmp.ne.s32.totalorder %s34, %s35
      %p49 = scmp.eq.s32.totalorder %s27, 1
      %p50 = por %p48, %p49
      %p52 = scmp.ne.s32.totalorder %s35, %s51
      %p53 = scmp.eq.s32.totalorder %s27, 0
      %p54 = por %p52, %p53
      %s56 = sadd.s32 %s55, 1
      %p59 = scmp.eq.s32.totalorder %s21, 1
      %p60 = scmp.ne.s32.totalorder %s55, %s57
      %p61 = scmp.eq.s32.totalorder %s21, 0
      %p62 = por %p60, %p61
      %p63 = scmp.ne.s32.totalorder %s55, %s57
      %p64 = scmp.eq.s32.totalorder %s26, 1
      %p65 = por %p63, %p64
      %p66 = scmp.ne.s32.totalorder %s57, %s58
      %p67 = scmp.eq.s32.totalorder %s26, 0
      %p68 = por %p66, %p67
      %p69 = scmp.ne.s32.totalorder %s57, %s58
      %p70 = scmp.eq.s32.totalorder %s27, 1
      %p71 = por %p69, %p70
      %p73 = scmp.ne.s32.totalorder %s58, %s72
      %p74 = scmp.eq.s32.totalorder %s27, 0
      %p75 = por %p73, %p74
      %s77 = sadd.s32 %s76, 1
      %p80 = scmp.eq.s32.totalorder %s21, 1
      %p81 = scmp.ne.s32.totalorder %s76, %s78
      %p82 = scmp.eq.s32.totalorder %s21, 0
      %p83 = por %p81, %p82
      %p84 = scmp.ne.s32.totalorder %s76, %s78
      %p85 = scmp.eq.s32.totalorder %s26, 1
      %p86 = por %p84, %p85
      %p87 = scmp.ne.s32.totalorder %s78, %s79
      %p88 = scmp.eq.s32.totalorder %s26, 0
      %p89 = por %p87, %p88
      %p90 = scmp.ne.s32.totalorder %s78, %s79
      %p91 = scmp.eq.s32.totalorder %s27, 1
      %p92 = por %p90, %p91
      %p94 = scmp.ne.s32.totalorder %s79, %s93
      %p95 = scmp.eq.s32.totalorder %s27, 0
      %p96 = por %p94, %p95
      %s97 = ssub.s32 %s21, %s28
      %p98 = scmp.eq.s32.totalorder %s97, 0
      %s100 = sadd.s32 %s99, 1
      %s101 = scalar_select %p98, %s99, %s100
      %p104 = pneg %p98
      %p105 = scmp.eq.s32.totalorder %s21, 1
      %p106 = por %p104, %p105
      %p107 = scmp.ne.s32.totalorder %s99, %s102
      %p108 = scmp.eq.s32.totalorder %s21, 0
      %p109 = por %p107, %p108
      %p110 = scmp.ne.s32.totalorder %s99, %s102
      %p111 = scmp.eq.s32.totalorder %s26, 1
      %p112 = por %p110, %p111
      %p113 = scmp.ne.s32.totalorder %s102, %s103
      %p114 = scmp.eq.s32.totalorder %s26, 0
      %p115 = por %p113, %p114
      %p116 = scmp.ne.s32.totalorder %s102, %s103
      %p117 = scmp.eq.s32.totalorder %s27, 1
      %p118 = por %p116, %p117
      %p120 = scmp.ne.s32.totalorder %s103, %s119
      %p121 = scmp.eq.s32.totalorder %s27, 0
      %p122 = por %p120, %p121
      %s123 = ssub.s32 %s21, %s28
      %p124 = scmp.eq.s32.totalorder %s123, 0
      %s126 = sadd.s32 %s125, 1
      %s127 = scalar_select %p124, %s125, %s126
      %p130 = pneg %p124
      %p131 = scmp.eq.s32.totalorder %s21, 1
      %p132 = por %p130, %p131
      %p133 = scmp.ne.s32.totalorder %s125, %s128
      %p134 = scmp.eq.s32.totalorder %s21, 0
      %p135 = por %p133, %p134
      %p136 = scmp.ne.s32.totalorder %s125, %s128
      %p137 = scmp.eq.s32.totalorder %s26, 1
      %p138 = por %p136, %p137
      %p139 = scmp.ne.s32.totalorder %s128, %s129
      %p140 = scmp.eq.s32.totalorder %s26, 0
      %p141 = por %p139, %p140
      %p142 = scmp.ne.s32.totalorder %s128, %s129
      %p143 = scmp.eq.s32.totalorder %s27, 1
      %p144 = por %p142, %p143
      %p146 = scmp.ne.s32.totalorder %s129, %s145
      %p147 = scmp.eq.s32.totalorder %s27, 0
      %p148 = por %p146, %p147
      %s149 = ssub.s32 %s21, %s28
      %p150 = scmp.eq.s32.totalorder %s149, 0
      %s152 = sadd.s32 %s151, 1
      %s153 = scalar_select %p150, %s151, %s152
      %p156 = pneg %p150
      %p157 = scmp.eq.s32.totalorder %s21, 1
      %p158 = por %p156, %p157
      %p159 = scmp.ne.s32.totalorder %s151, %s154
      %p160 = scmp.eq.s32.totalorder %s21, 0
      %p161 = por %p159, %p160
      %p162 = scmp.ne.s32.totalorder %s151, %s154
      %p163 = scmp.eq.s32.totalorder %s26, 1
      %p164 = por %p162, %p163
      %p165 = scmp.ne.s32.totalorder %s154, %s155
      %p166 = scmp.eq.s32.totalorder %s26, 0
      %p167 = por %p165, %p166
      %p168 = scmp.ne.s32.totalorder %s154, %s155
      %p169 = scmp.eq.s32.totalorder %s27, 1
      %p170 = por %p168, %p169
      %p172 = scmp.ne.s32.totalorder %s155, %s171
      %p173 = scmp.eq.s32.totalorder %s27, 0
      %p174 = por %p172, %p173
      %p175 = scmp.le.s32.totalorder 1, %s21
      %p176 = scmp.lt.s32.totalorder %s21, 3
      %p177 = pnand %p175, %p176
      %p178 = pneg %p177
      // Predicated region
      $region9: #{tpu_custom_call.1} parent=5 // pred_check
        _
      $region10: #{tpu_custom_call.1} parent=5 // pred_check_branch
        %180 = sbr.rel (%p177) target = $region12
      $region11: #{tpu_custom_call.1} parent=5 // pred_region
        %s181 = ssub.s32 %s21, 1
        // Predicated region
        $region13: #{tpu_custom_call.1} parent=11 // pred_check
          %p182 = pneg %p68
        $region14: #{tpu_custom_call.1} parent=11 // pred_check_branch
          %184 = sbr.rel (%p182) target = $region16
        $region15: #{tpu_custom_call.1} parent=11 // pred_region
          _
        $region16: #{tpu_custom_call.1} parent=11 // pred_fallthru
          _
        // Predicated region
        $region17: #{tpu_custom_call.1} parent=11 // pred_check
          %p185 = pneg %p89
        $region18: #{tpu_custom_call.1} parent=11 // pred_check_branch
          %187 = sbr.rel (%p185) target = $region20
        $region19: #{tpu_custom_call.1} parent=11 // pred_region
          _
        $region20: #{tpu_custom_call.1} parent=11 // pred_fallthru
          _
      $region12: #{tpu_custom_call.1} parent=5 // pred_fallthru
        _
      %p188 = scmp.lt.s32.totalorder %s21, 2
      // Predicated region
      $region21: #{tpu_custom_call.1} parent=5 // pred_check
        %p189 = pneg %p188
      $region22: #{tpu_custom_call.1} parent=5 // pred_check_branch
        %191 = sbr.rel (%p189) target = $region24
      $region23: #{tpu_custom_call.1} parent=5 // pred_region
        // Predicated region
        $region25: #{tpu_custom_call.1} parent=23 // pred_check
          %p192 = pneg %p41
        $region26: #{tpu_custom_call.1} parent=23 // pred_check_branch
          %194 = sbr.rel (%p192) target = $region28
        $region27: #{tpu_custom_call.1} parent=23 // pred_region
          %s195 = sand.u32 %s31, 1
          %s196 = scalar_lea.sflag [#allocation3], %s195
          %s197 = sand.u32 %s31, 1
          %s198 = smul.addr %s197, 4
          %s199 = scalar_lea.vmem [#allocation2], %s198
          %s201 = ssub.s32 64, 64
          %202 = vsyncadd %s196, %s201
          %s203 = smul.addr %s21, 64
          %s204 = scalar_lea.hbm %s0, %s203
          %s206 = sshll.u32 %s199, 4
          %s207 = int_to_ptr.vmem [resolvable:$true] %s206
          %209 = dma.hbm_to_vmem [thread:$0]  %s204, 64, %s207, %s196
        $region28: #{tpu_custom_call.1} parent=23 // pred_fallthru
          _
      $region24: #{tpu_custom_call.1} parent=5 // pred_fallthru
        _
      %p210 = scmp.le.s32.totalorder 1, %s21
      %p211 = scmp.lt.s32.totalorder %s21, 3
      %p212 = pnand %p210, %p211
      %p213 = pneg %p212
      // Predicated region
      $region29: #{tpu_custom_call.1} parent=5 // pred_check
        _
      $region30: #{tpu_custom_call.1} parent=5 // pred_check_branch
        %215 = sbr.rel (%p212) target = $region32
      $region31: #{tpu_custom_call.1} parent=5 // pred_region
        %s216 = ssub.s32 %s21, 1
        %s217 = sand.u32 %s34, 1
        %s218 = scalar_lea.sflag [#allocation3], %s217
        %s219 = sand.u32 %s34, 1
        %s220 = smul.addr %s219, 4
        %s221 = scalar_lea.vmem [#allocation2], %s220
        // Predicated region
        $region33: #{tpu_custom_call.1} parent=31 // pred_check
          %p222 = pneg %p47
        $region34: #{tpu_custom_call.1} parent=31 // pred_check_branch
          %224 = sbr.rel (%p222) target = $region36
        $region35: #{tpu_custom_call.1} parent=31 // pred_region
          %225 = dma.done %s218, 64
        $region36: #{tpu_custom_call.1} parent=31 // pred_fallthru
          _
        %s226 = sand.u32 %s34, 1
        %s227 = scalar_lea.sflag [#allocation3], %s226
        %s228 = sand.u32 %s34, 1
        %s229 = smul.addr %s228, 4
        %s230 = scalar_lea.vmem [#allocation2], %s229
        %p231 = pneg %p47
        %p232 = pneg %p44
        %p233 = pneg %p68
        %p234 = pneg %p65
        %p235 = pneg %p89
        %p236 = pneg %p86
        %p237 = pneg %p115
        %p238 = pneg %p112
        %s239 = sand.u32 %s102, 1
        %s240 = scalar_lea.sflag [#allocation4], %s239
        %s241 = sand.u32 %s102, 1
        %s242 = smul.addr %s241, 4
        %s243 = scalar_lea.vmem [#allocation5], %s242
        %p244 = pneg %p141
        %p245 = pneg %p138
        %s246 = sand.u32 %s26, 1
        %s247 = scalar_lea.sflag [#allocation7], %s246
        %s248 = sand.u32 %s128, 1
        %s249 = scalar_lea.vmem [#allocation6], %s248
        %p250 = pneg %p167
        %p251 = pneg %p164
        %s252 = sand.u32 %s26, 1
        %s253 = scalar_lea.sflag [#allocation7], %s252
        %s254 = sand.u32 %s154, 1
        %s255 = scalar_lea.vmem [#allocation8], %s254
        %v256 = vld [vmem:[%s221] sm:$0xf]
        %vm257 = vcmask 1043456
        %v258 = vsel %vm257, %v256, 0.0
        %v259 = vrot.slane %v258, 4
        %v260 = vadd.f32 %v258, %v259
        %v261 = vrot.slane %v260, 2
        %v262 = vadd.f32 %v260, %v261
        %v263 = vrot.slane %v262, 1
        %v264 = vadd.f32 %v262, %v263
        %265 = vrot.lane.b32.xlu0 %v264, 32
        %v266 = vpop.permute.xlu0 %265
        %v267 = vadd.f32 %v264, %v266
        %268 = vrot.lane.b32.xlu0 %v267, 64
        %v269 = vpop.permute.xlu0 %268
        %v270 = vadd.f32 %v267, %v269
        %v271 = vmul.f32 %v270, 0.0625
        %v272 = vlaneseq
        %v273 = vshrl.u32 %v272, 7
        %v274 = vsub.s32 0, %v273
        %v275 = vrot.slane %v271, %v274
        %v276 = vsub.f32 %v256, %v275
        %v277 = vmul.f32 %v276, %v276
        %v278 = vsel %vm257, %v277, 0.0
        %v279 = vrot.slane %v278, 4
        %v280 = vadd.f32 %v278, %v279
        %v281 = vrot.slane %v280, 2
        %v282 = vadd.f32 %v280, %v281
        %v283 = vrot.slane %v282, 1
        %v284 = vadd.f32 %v282, %v283
        %285 = vrot.lane.b32.xlu0 %v284, 32
        %v286 = vpop.permute.xlu0 %285
        %v287 = vadd.f32 %v284, %v286
        %288 = vrot.lane.b32.xlu0 %v287, 64
        %v289 = vpop.permute.xlu0 %288
        %v290 = vadd.f32 %v287, %v289
        %v291 = vmul.f32 %v290, 0.0625
        %v292 = vmax.f32 %v291, 0.0
        %v293 = vadd.f32 %v292, 1e-05
        %v294 = vrsqrt.pop %v293
        %v295 = vmul.f32 %v293, %v294
        %vm296 = vcmp.eq.f32.partialorder %v293, inf
        %v297 = vsel %vm296, %v293, %v295
        %vm298 = vcmp.eq.f32.partialorder %v293, 0.0
        %v299 = vand.u32 %v293, 2147483648
        %v300 = vsel %vm298, %v299, %v297
        %v301 = vrcp.pop %v300
        %v302 = vmul.f32 1.0, %v301
        %v303 = vld [vmem:[%s1] sm:$0x1]
        %v304 = vld [vmem:[%s2] sm:$0x1]
        %v305 = vmul.f32 %v303, %v302
        %v306 = vmul.f32 %v271, %v305
        %v307 = vsub.f32 %v304, %v306
        %v309 = vlaneseq
        %v310 = vshrl.u32 %v309, 7
        %v311 = vsub.s32 0, %v310
        %v312 = vrot.slane %v305, %v311
        %v314 = vmul.f32 %v256, %v312
        %v316 = vlaneseq
        %v317 = vshrl.u32 %v316, 7
        %v318 = vsub.s32 0, %v317
        %v319 = vrot.slane %v307, %v318
        %v321 = vadd.f32 %v314, %v319
        %322 = vst [vmem:[%s243] sm:$0xf] %v321
        %vm323 = vcmask 253952
        %324 = vst.msk [vmem:[%s249] sm:$0x1] %vm323, %v271
        %325 = vst.msk [vmem:[%s255] sm:$0x1] %vm323, %v300
        %s326 = sand.u32 %s102, 1
        %s327 = scalar_lea.sflag [#allocation4], %s326
        %s328 = sand.u32 %s102, 1
        %s329 = smul.addr %s328, 4
        %s330 = scalar_lea.vmem [#allocation5], %s329
        %s331 = sand.u32 %s26, 1
        %s332 = scalar_lea.sflag [#allocation7], %s331
        %s333 = sand.u32 %s128, 1
        %s334 = scalar_lea.vmem [#allocation6], %s333
        %s335 = sand.u32 %s26, 1
        %s336 = scalar_lea.sflag [#allocation7], %s335
        %s337 = sand.u32 %s154, 1
        %s338 = scalar_lea.vmem [#allocation8], %s337
        // Predicated region
        $region37: #{tpu_custom_call.1} parent=31 // pred_check
          %p339 = pneg %p112
        $region38: #{tpu_custom_call.1} parent=31 // pred_check_branch
          %341 = sbr.rel (%p339) target = $region40
        $region39: #{tpu_custom_call.1} parent=31 // pred_region
          %s343 = ssub.s32 64, 64
          %344 = vsyncadd %s327, %s343
          %s345 = smul.addr %s26, 64
          %s346 = scalar_lea.hbm %s3, %s345
          %s348 = sshll.u32 %s330, 4
          %s349 = int_to_ptr.vmem [resolvable:$true] %s348
          %351 = dma.vmem_to_hbm [thread:$0]  %s349, 64, %s346, %s327
        $region40: #{tpu_custom_call.1} parent=31 // pred_fallthru
          _
        // Predicated region
        $region41: #{tpu_custom_call.1} parent=31 // pred_check
          %p352 = pneg %p138
        $region42: #{tpu_custom_call.1} parent=31 // pred_check_branch
          %354 = sbr.rel (%p352) target = $region44
        $region43: #{tpu_custom_call.1} parent=31 // pred_region
          %s356 = ssub.s32 16, 16
          %357 = vsyncadd %s332, %s356
          %s358 = smul.addr %s26, 16
          %s359 = scalar_lea.hbm %s4, %s358
          %s361 = sshll.u32 %s334, 4
          %s362 = int_to_ptr.vmem [resolvable:$true] %s361
          %364 = dma.vmem_to_hbm [thread:$0]  %s362, 16, %s359, %s332
        $region44: #{tpu_custom_call.1} parent=31 // pred_fallthru
          _
        // Predicated region
        $region45: #{tpu_custom_call.1} parent=31 // pred_check
          %p365 = pneg %p164
        $region46: #{tpu_custom_call.1} parent=31 // pred_check_branch
          %367 = sbr.rel (%p365) target = $region48
        $region47: #{tpu_custom_call.1} parent=31 // pred_region
          %s369 = ssub.s32 16, 16
          %370 = vsyncadd %s336, %s369
          %s371 = smul.addr %s26, 16
          %s372 = scalar_lea.hbm %s5, %s371
          %s374 = sshll.u32 %s338, 4
          %s375 = int_to_ptr.vmem [resolvable:$true] %s374
          %377 = dma.vmem_to_hbm [thread:$0]  %s375, 16, %s372, %s336
        $region48: #{tpu_custom_call.1} parent=31 // pred_fallthru
          _
      $region32: #{tpu_custom_call.1} parent=5 // pred_fallthru
        _
      %p378 = scmp.le.s32.totalorder 2, %s21
      // Predicated region
      $region49: #{tpu_custom_call.1} parent=5 // pred_check
        %p379 = pneg %p378
      $region50: #{tpu_custom_call.1} parent=5 // pred_check_branch
        %381 = sbr.rel (%p379) target = $region52
      $region51: #{tpu_custom_call.1} parent=5 // pred_region
        %s382 = ssub.s32 %s21, 2
        // Predicated region
        $region53: #{tpu_custom_call.1} parent=51 // pred_check
          %p383 = pneg %p118
        $region54: #{tpu_custom_call.1} parent=51 // pred_check_branch
          %385 = sbr.rel (%p383) target = $region56
        $region55: #{tpu_custom_call.1} parent=51 // pred_region
          %s386 = sand.u32 %s103, 1
          %s387 = scalar_lea.sflag [#allocation4], %s386
          %s388 = sand.u32 %s103, 1
          %s389 = smul.addr %s388, 4
          %s390 = scalar_lea.vmem [#allocation5], %s389
          %391 = dma.done %s387, 64
        $region56: #{tpu_custom_call.1} parent=51 // pred_fallthru
          _
        // Predicated region
        $region57: #{tpu_custom_call.1} parent=51 // pred_check
          %p392 = pneg %p144
        $region58: #{tpu_custom_call.1} parent=51 // pred_check_branch
          %394 = sbr.rel (%p392) target = $region60
        $region59: #{tpu_custom_call.1} parent=51 // pred_region
          %s395 = sand.u32 %s27, 1
          %s396 = scalar_lea.sflag [#allocation7], %s395
          %s397 = sand.u32 %s129, 1
          %s398 = scalar_lea.vmem [#allocation6], %s397
          %399 = dma.done %s396, 16
        $region60: #{tpu_custom_call.1} parent=51 // pred_fallthru
          _
        // Predicated region
        $region61: #{tpu_custom_call.1} parent=51 // pred_check
          %p400 = pneg %p170
        $region62: #{tpu_custom_call.1} parent=51 // pred_check_branch
          %402 = sbr.rel (%p400) target = $region64
        $region63: #{tpu_custom_call.1} parent=51 // pred_region
          %s403 = sand.u32 %s27, 1
          %s404 = scalar_lea.sflag [#allocation7], %s403
          %s405 = sand.u32 %s155, 1
          %s406 = scalar_lea.vmem [#allocation8], %s405
          %407 = dma.done %s404, 16
        $region64: #{tpu_custom_call.1} parent=51 // pred_fallthru
          _
      $region52: #{tpu_custom_call.1} parent=5 // pred_fallthru
        _
    $region6: #{tpu_custom_call.1} parent=1 // loop_footer
      %s25 = sadd.s32 1, %s21
    $region7: #{tpu_custom_call.1} parent=1 // loop_footer_branch
      %20 = sbr.rel target = $region3
    $region8: #{tpu_custom_call.1} parent=1 // loop_exit
      _
    %408 = vsyncpa [#allocation3], 1
    %s409 = scalar_lea.sflag [#allocation3], 1
    %410 = vsyncpa %s409, 1
    %411 = vsyncpa [#allocation4], 1
    %s412 = scalar_lea.sflag [#allocation4], 1
    %413 = vsyncpa %s412, 1
    %414 = vsyncpa [#allocation7], 1
    %s415 = scalar_lea.sflag [#allocation7], 1
    %416 = vsyncpa %s415, 1

</llo_original>
